<compile_context>
chip_gen: v7x
topology: tpu7x:2x2x1
jax: 0.10.0
libtpu: 0.0.40
codegen_flags: <defaults>
</compile_context>

<pallas_src>
import functools

import jax
import jax.numpy as jnp
from jax.experimental import pallas as pl
from jax.experimental.pallas import tpu as pltpu


LANE = 128      # lane width: last-dim padding target
SUBLANE = 8     # sublane width: batch-tile granularity


def _round_up(x, m):
    return ((x + m - 1) // m) * m


def mlp_softmax_kernel(x_ref, w1_ref, b1_ref, w2_ref, b2_ref, o_ref):
    # fcl_1: (TB, In_p) @ (In_p, H_p) + (1, H_p), f32 accumulation on the MXU.
    h = jnp.dot(x_ref[...], w1_ref[...],
                preferred_element_type=jnp.float32) + b1_ref[...]

    # fcl_2: (TB, H_p) @ (H_p, O_p) + (1, O_p).  Cast h to the weight dtype so
    # bf16 params keep a uniform-dtype MXU path (no-op when everything is f32).
    logits = jnp.dot(h.astype(w2_ref.dtype), w2_ref[...],
                     preferred_element_type=jnp.float32) + b2_ref[...]

    # Numerically-stable softmax along the class axis (dim=1 of the 2-D input).
    # Padded class columns carry a -1e30 bias, so exp() underflows to 0 and
    # the normalization only sees the real classes.  Exact division keeps the
    # row sums at 1 to f32 precision (approx reciprocal was too coarse).
    m = jnp.max(logits, axis=-1, keepdims=True)
    e = jnp.exp(logits - m)
    denom = jnp.sum(e, axis=-1, keepdims=True)
    o_ref[...] = (e / denom).astype(o_ref.dtype)


def _choose_batch_tile(batch, in_p, h_p, o_p, itemsize,
                       max_tb=512, vmem_budget_bytes=24 * 1024 * 1024):
    """Largest multiple-of-8 batch tile <= max_tb that fits the VMEM budget.

    Budget (per grid step): double-buffered x + out tiles, the resident padded
    weights/biases (f32-conservative), and the f32 hidden intermediate.
    Keeps comfortably under v7x's default scoped VMEM.
    """
    weight_bytes = (in_p * h_p + h_p * o_p + h_p + o_p) * 4

    def step_bytes(tb):
        return (2 * tb * (in_p + o_p)) * itemsize + tb * h_p * 4 + weight_bytes

    tb = min(max_tb, _round_up(batch, SUBLANE))
    tb = max(SUBLANE, (tb // SUBLANE) * SUBLANE)
    while tb > SUBLANE and step_bytes(tb) > vmem_budget_bytes:
        tb -= SUBLANE
    return tb


@functools.partial(jax.jit, static_argnames=("block_b",))
def softmax_mlp(x, w1, b1, w2, b2, *, block_b=512):
    """x: (B, In); w1: (In, H); b1: (1, H); w2: (H, O); b2: (1, O)."""
    B, In = x.shape
    H = w1.shape[1]
    O = w2.shape[1]

    # --- wrapper-side padding to MXU/lane-friendly shapes --------------------
    In_p = _round_up(In, LANE)
    H_p = _round_up(H, LANE)
    O_p = _round_up(O, LANE)

    TB = _choose_batch_tile(B, In_p, H_p, O_p, x.dtype.itemsize,
                            max_tb=block_b)
    B_p = _round_up(B, TB)

    f32 = jnp.float32
    x_p = jnp.zeros((B_p, In_p), x.dtype).at[:B, :In].set(x)
    w1_p = jnp.zeros((In_p, H_p), w1.dtype).at[:In, :H].set(w1)
    b1_p = jnp.zeros((1, H_p), f32).at[:, :H].set(b1.astype(f32))
    w2_p = jnp.zeros((H_p, O_p), w2.dtype).at[:H, :O].set(w2)
    # Padded class columns get a huge negative bias -> softmax weight 0.
    b2_p = jnp.full((1, O_p), -1e30, f32).at[:, :O].set(b2.astype(f32))

    grid = (B_p // TB,)

    out_p = pl.pallas_call(
        mlp_softmax_kernel,
        out_shape=jax.ShapeDtypeStruct((B_p, O_p), x.dtype),
        grid=grid,
        in_specs=[
            pl.BlockSpec((TB, In_p), lambda i: (i, 0)),     # x: tiled over batch
            pl.BlockSpec((In_p, H_p), lambda i: (0, 0)),    # w1: resident
            pl.BlockSpec((1, H_p), lambda i: (0, 0)),       # b1: resident
            pl.BlockSpec((H_p, O_p), lambda i: (0, 0)),     # w2: resident
            pl.BlockSpec((1, O_p), lambda i: (0, 0)),       # b2: resident
        ],
        out_specs=pl.BlockSpec((TB, O_p), lambda i: (i, 0)),
        compiler_params=pltpu.CompilerParams(
            dimension_semantics=("parallel",),
        ),
    )(x_p, w1_p, b1_p, w2_p, b2_p)

    return out_p[:B, :O]


def init_linear_params(key, fan_in, fan_out):
    """PyTorch nn.Linear default init: U(-1/sqrt(fan_in), 1/sqrt(fan_in))."""
    kw, kb = jax.random.split(key)
    bound = 1.0 / jnp.sqrt(jnp.float32(fan_in))
    # PyTorch stores weight as (out, in); we store the transpose (in, out) so
    # the kernel multiplies without a transpose on the MXU path.
    w = jax.random.uniform(kw, (fan_in, fan_out), jnp.float32, -bound, bound)
    b = jax.random.uniform(kb, (1, fan_out), jnp.float32, -bound, bound)
    return w, b


if __name__ == "__main__":
    # Small shapes implied by the module's forward (2-D input: batch x features).
    batch, input_size, hidden_size, output_size = 8, 32, 64, 16

    key = jax.random.PRNGKey(0)
    kx, k1, k2 = jax.random.split(key, 3)

    x = jax.random.normal(kx, (batch, input_size), jnp.float32)
    w1, b1 = init_linear_params(k1, input_size, hidden_size)
    w2, b2 = init_linear_params(k2, hidden_size, output_size)

    out = softmax_mlp(x, w1, b1, w2, b2)
    out = jax.block_until_ready(out)

    # Pure-JAX reference check.
    ref = jax.nn.softmax(((x @ w1) + b1) @ w2 + b2, axis=1)
    assert out.shape == (batch, output_size)
    assert jnp.allclose(out, ref, atol=2e-3, rtol=2e-3)
    assert jnp.allclose(jnp.sum(out, axis=1), 1.0, atol=1e-3)

    print("KERNEL_OK")
</pallas_src>

<mosaic_0001>
module attributes {stable_mosaic.version = 11 : i64} {
  func.func @mlp_softmax_kernel(%arg0: i32, %arg1: memref<8x128xf32, #tpu.memory_space<vmem>>, %arg2: memref<128x128xf32, #tpu.memory_space<vmem>>, %arg3: memref<1x128xf32, #tpu.memory_space<vmem>>, %arg4: memref<128x128xf32, #tpu.memory_space<vmem>>, %arg5: memref<1x128xf32, #tpu.memory_space<vmem>>, %arg6: memref<8x128xf32, #tpu.memory_space<vmem>>) attributes {dimension_semantics = [#tpu.dimension_semantics<parallel>], iteration_bounds = array<i64: 1>, scalar_prefetch = 0 : i64, scratch_operands = 0 : i64, tpu.core_type = #tpu.core_type<tc>, window_params = [{transform_indices = @transform_0, window_bounds = array<i64: 8, 128>}, {pipeline_mode = #tpu.pipeline_mode<synchronous>, transform_indices = @transform_1, window_bounds = array<i64: 128, 128>}, {pipeline_mode = #tpu.pipeline_mode<synchronous>, transform_indices = @transform_2, window_bounds = array<i64: 1, 128>}, {pipeline_mode = #tpu.pipeline_mode<synchronous>, transform_indices = @transform_3, window_bounds = array<i64: 128, 128>}, {pipeline_mode = #tpu.pipeline_mode<synchronous>, transform_indices = @transform_4, window_bounds = array<i64: 1, 128>}, {transform_indices = @transform_5, window_bounds = array<i64: 8, 128>}]} {
    %c0 = arith.constant 0 : index
    %c0_0 = arith.constant 0 : index
    %0 = vector.load %arg1[%c0, %c0_0] : memref<8x128xf32, #tpu.memory_space<vmem>>, vector<8x128xf32>
    %c0_1 = arith.constant 0 : index
    %c0_2 = arith.constant 0 : index
    %1 = vector.load %arg2[%c0_1, %c0_2] : memref<128x128xf32, #tpu.memory_space<vmem>>, vector<128x128xf32>
    %cst = arith.constant dense<0.000000e+00> : vector<8x128xf32>
    %2 = tpu.matmul %0, %1, %cst {dimension_numbers = #tpu.dot_dimension_numbers<[1], [0], [0], [1], [0, 0, 1, 1], [], []>} : vector<8x128xf32>, vector<128x128xf32>, vector<8x128xf32> -> vector<8x128xf32>
    %c0_3 = arith.constant 0 : index
    %c0_4 = arith.constant 0 : index
    %3 = vector.load %arg3[%c0_3, %c0_4] : memref<1x128xf32, #tpu.memory_space<vmem>>, vector<1x128xf32>
    %4 = vector.broadcast %3 : vector<1x128xf32> to vector<8x128xf32>
    %5 = arith.addf %2, %4 : vector<8x128xf32>
    %c0_5 = arith.constant 0 : index
    %c0_6 = arith.constant 0 : index
    %6 = vector.load %arg4[%c0_5, %c0_6] : memref<128x128xf32, #tpu.memory_space<vmem>>, vector<128x128xf32>
    %cst_7 = arith.constant dense<0.000000e+00> : vector<8x128xf32>
    %7 = tpu.matmul %5, %6, %cst_7 {dimension_numbers = #tpu.dot_dimension_numbers<[1], [0], [0], [1], [0, 0, 1, 1], [], []>} : vector<8x128xf32>, vector<128x128xf32>, vector<8x128xf32> -> vector<8x128xf32>
    %c0_8 = arith.constant 0 : index
    %c0_9 = arith.constant 0 : index
    %8 = vector.load %arg5[%c0_8, %c0_9] : memref<1x128xf32, #tpu.memory_space<vmem>>, vector<1x128xf32>
    %9 = vector.broadcast %8 : vector<1x128xf32> to vector<8x128xf32>
    %10 = arith.addf %7, %9 : vector<8x128xf32>
    %cst_10 = arith.constant dense<0xFF800000> : vector<8xf32>
    %11 = vector.multi_reduction <maximumf>, %10, %cst_10 [1] : vector<8x128xf32> to vector<8xf32>
    %12 = vector.shape_cast %11 : vector<8xf32> to vector<8x1xf32>
    %13 = vector.broadcast %12 : vector<8x1xf32> to vector<8x128xf32>
    %14 = arith.subf %10, %13 : vector<8x128xf32>
    %15 = math.exp %14 : vector<8x128xf32>
    %cst_11 = arith.constant dense<0.000000e+00> : vector<8xf32>
    %16 = vector.multi_reduction <add>, %15, %cst_11 [1] : vector<8x128xf32> to vector<8xf32>
    %17 = vector.shape_cast %16 : vector<8xf32> to vector<8x1xf32>
    %18 = vector.broadcast %17 : vector<8x1xf32> to vector<8x128xf32>
    %19 = arith.divf %15, %18 : vector<8x128xf32>
    %c0_12 = arith.constant 0 : index
    %c0_13 = arith.constant 0 : index
    %20 = vector.load %arg6[%c0_12, %c0_13] : memref<8x128xf32, #tpu.memory_space<vmem>>, vector<8x128xf32>
    tpu.vector_store %arg6[%c0_12, %c0_13], %19 {strides = array<i32>} : memref<8x128xf32, #tpu.memory_space<vmem>>, vector<8x128xf32>,
    return
  }
  func.func @transform_0(%arg0: i32) -> (i32, i32) {
    %c0_i32 = arith.constant 0 : i32
    %c0_i32_0 = arith.constant 0 : i32
    return %arg0, %c0_i32 : i32, i32
  }
  func.func @transform_1(%arg0: i32) -> (i32, i32) {
    %c0_i32 = arith.constant 0 : i32
    %c0_i32_0 = arith.constant 0 : i32
    %c0_i32_1 = arith.constant 0 : i32
    return %c0_i32, %c0_i32_0 : i32, i32
  }
  func.func @transform_2(%arg0: i32) -> (i32, i32) {
    %c0_i32 = arith.constant 0 : i32
    %c0_i32_0 = arith.constant 0 : i32
    %c0_i32_1 = arith.constant 0 : i32
    return %c0_i32, %c0_i32_0 : i32, i32
  }
  func.func @transform_3(%arg0: i32) -> (i32, i32) {
    %c0_i32 = arith.constant 0 : i32
    %c0_i32_0 = arith.constant 0 : i32
    %c0_i32_1 = arith.constant 0 : i32
    return %c0_i32, %c0_i32_0 : i32, i32
  }
  func.func @transform_4(%arg0: i32) -> (i32, i32) {
    %c0_i32 = arith.constant 0 : i32
    %c0_i32_0 = arith.constant 0 : i32
    %c0_i32_1 = arith.constant 0 : i32
    return %c0_i32, %c0_i32_0 : i32, i32
  }
  func.func @transform_5(%arg0: i32) -> (i32, i32) {
    %c0_i32 = arith.constant 0 : i32
    %c0_i32_0 = arith.constant 0 : i32
    return %arg0, %c0_i32 : i32, i32
  }
}

</mosaic_0001>

<llo_original>
// kernel: softmax_mlp.1
$region0: #{softmax_mlp.1}
  #allocation0 [shape = 'u32[]', space=smem, size = 0x4, offset = 0x4, fixed_abs, tag = 'smem constant byte address 0x4 - core index']
  #allocation1 [shape = 'u32[144,128]{1,0:T(1,128)}', space=vmem, size = 0x12000, scoped, tag = 'internal scratch']
  %s0 = inlined_call_operand.vmem [shape: f32[8,128], index: 0, kind: input, shape index: {}]
  %s1 = inlined_call_operand.vmem [shape: f32[128,128], index: 1, kind: input, shape index: {}]
  %s2 = inlined_call_operand.vmem [shape: f32[1,128], index: 2, kind: input, shape index: {}]
  %s3 = inlined_call_operand.vmem [shape: f32[128,128], index: 3, kind: input, shape index: {}]
  %s4 = inlined_call_operand.vmem [shape: f32[1,128], index: 4, kind: input, shape index: {}]
  %s5 = inlined_call_operand.hbm [shape: f32[8,128], index: 5, kind: output, shape index: {}]
  %s6 = sld [smem:[#allocation0]]
  $region30: #{softmax_mlp.1} parent=0
    _
  %s8 = ssub.s32 1, %s6
  %s9 = scalar_select 0, %s8, %s6
  $region1: #{softmax_mlp.1} parent=0
    #allocation2 [shape = 'u8[4096]{0}', space=vmem, size = 0x1000, scoped, tag = 'output window, operand 0, single buffered']
    #allocation3 [shape = 's32[1]{0}', space=sflag, size = 0x4, scoped, tag = 'scoped memory for softmax_mlp.1']
    %10 = vsyncpa [#allocation3], 0
    // Predicated region
    $region2: #{softmax_mlp.1} parent=1 // pred_check
      _
    $region3: #{softmax_mlp.1} parent=1 // pred_check_branch
      %12 = sbr.rel (0) target = $region5
    $region4: #{softmax_mlp.1} parent=1 // pred_region
      _
    $region5: #{softmax_mlp.1} parent=1 // pred_fallthru
      _
    // Predicated region
    $region6: #{softmax_mlp.1} parent=1 // pred_check
      _
    $region7: #{softmax_mlp.1} parent=1 // pred_check_branch
      %14 = sbr.rel (0) target = $region9
    $region8: #{softmax_mlp.1} parent=1 // pred_region
      _
    $region9: #{softmax_mlp.1} parent=1 // pred_fallthru
      _
    // Predicated region
    $region10: #{softmax_mlp.1} parent=1 // pred_check
      _
    $region11: #{softmax_mlp.1} parent=1 // pred_check_branch
      %16 = sbr.rel (0) target = $region13
    $region12: #{softmax_mlp.1} parent=1 // pred_region
      _
    $region13: #{softmax_mlp.1} parent=1 // pred_fallthru
      _
    // Predicated region
    $region14: #{softmax_mlp.1} parent=1 // pred_check
      _
    $region15: #{softmax_mlp.1} parent=1 // pred_check_branch
      %18 = sbr.rel (0) target = $region17
    $region16: #{softmax_mlp.1} parent=1 // pred_region
      _
    $region17: #{softmax_mlp.1} parent=1 // pred_fallthru
      _
    // Predicated region
    $region18: #{softmax_mlp.1} parent=1 // pred_check
      _
    $region19: #{softmax_mlp.1} parent=1 // pred_check_branch
      %20 = sbr.rel (0) target = $region21
    $region20: #{softmax_mlp.1} parent=1 // pred_region
      _
    $region21: #{softmax_mlp.1} parent=1 // pred_fallthru
      _
    %v21 = vld [vmem:[%s0] sm:$0xff]
    %v22 = vld [vmem:[%s1] sm:$0xff]
    %v23 = vld [vmem:[%s1 + $0x8] sm:$0xff]
    %v24 = vld [vmem:[%s1 + $0x10] sm:$0xff]
    %v25 = vld [vmem:[%s1 + $0x18] sm:$0xff]
    %v26 = vld [vmem:[%s1 + $0x20] sm:$0xff]
    %v27 = vld [vmem:[%s1 + $0x28] sm:$0xff]
    %v28 = vld [vmem:[%s1 + $0x30] sm:$0xff]
    %v29 = vld [vmem:[%s1 + $0x38] sm:$0xff]
    %v30 = vld [vmem:[%s1 + $0x40] sm:$0xff]
    %v31 = vld [vmem:[%s1 + $0x48] sm:$0xff]
    %v32 = vld [vmem:[%s1 + $0x50] sm:$0xff]
    %v33 = vld [vmem:[%s1 + $0x58] sm:$0xff]
    %v34 = vld [vmem:[%s1 + $0x60] sm:$0xff]
    %v35 = vld [vmem:[%s1 + $0x68] sm:$0xff]
    %v36 = vld [vmem:[%s1 + $0x70] sm:$0xff]
    %v37 = vld [vmem:[%s1 + $0x78] sm:$0xff]
    %v38 = vld [vmem:[%s2] sm:$0x1]
    %v40 = vlaneseq
    %v41 = vshrl.u32 %v40, 7
    %v42 = vsub.s32 0, %v41
    %v43 = vrot.slane %v38, %v42
    %45 = vmatprep.subr.mxu0 0.0
    %46 = vmatpush1.msra.mxu0 %v22
    %47 = vmatprep.subr.mxu0 0.0
    %48 = vmatpush1.msra.mxu0 %v23
    %49 = vmatprep.subr.mxu0 0.0
    %50 = vmatpush1.msra.mxu0 %v24
    %51 = vmatprep.subr.mxu0 0.0
    %52 = vmatpush1.msra.mxu0 %v25
    %53 = vmatprep.subr.mxu0 0.0
    %54 = vmatpush1.msra.mxu0 %v26
    %55 = vmatprep.subr.mxu0 0.0
    %56 = vmatpush1.msra.mxu0 %v27
    %57 = vmatprep.subr.mxu0 0.0
    %58 = vmatpush1.msra.mxu0 %v28
    %59 = vmatprep.subr.mxu0 0.0
    %60 = vmatpush1.msra.mxu0 %v29
    %61 = vmatprep.subr.mxu0 0.0
    %62 = vmatpush1.msra.mxu0 %v30
    %63 = vmatprep.subr.mxu0 0.0
    %64 = vmatpush1.msra.mxu0 %v31
    %65 = vmatprep.subr.mxu0 0.0
    %66 = vmatpush1.msra.mxu0 %v32
    %67 = vmatprep.subr.mxu0 0.0
    %68 = vmatpush1.msra.mxu0 %v33
    %69 = vmatprep.subr.mxu0 0.0
    %70 = vmatpush1.msra.mxu0 %v34
    %71 = vmatprep.subr.mxu0 0.0
    %72 = vmatpush1.msra.mxu0 %v35
    %73 = vmatprep.subr.mxu0 0.0
    %74 = vmatpush1.msra.mxu0 %v36
    %75 = vmatprep.subr.mxu0 0.0
    %76 = vmatpush1.msra.mxu0 %v37
    %77 = vmatprep.subr.mxu0 0.0
    %78 = vmatpush1.msra.mxu0 0.0
    %79 = vmatprep.subr.mxu0 0.0
    %80 = vmatpush1.msra.mxu0 0.0
    %81 = vmatprep.subr.mxu0 0.0
    %82 = vmatpush1.msra.mxu0 0.0
    %83 = vmatprep.subr.mxu0 0.0
    %84 = vmatpush1.msra.mxu0 0.0
    %85 = vmatprep.subr.mxu0 0.0
    %86 = vmatpush1.msra.mxu0 0.0
    %87 = vmatprep.subr.mxu0 0.0
    %88 = vmatpush1.msra.mxu0 0.0
    %89 = vmatprep.subr.mxu0 0.0
    %90 = vmatpush1.msra.mxu0 0.0
    %91 = vmatprep.subr.mxu0 0.0
    %92 = vmatpush1.msra.mxu0 0.0
    %93 = vmatprep.subr.mxu0 0.0
    %94 = vmatpush1.msra.mxu0 0.0
    %95 = vmatprep.subr.mxu0 0.0
    %96 = vmatpush1.msra.mxu0 0.0
    %97 = vmatprep.subr.mxu0 0.0
    %98 = vmatpush1.msra.mxu0 0.0
    %99 = vmatprep.subr.mxu0 0.0
    %100 = vmatpush1.msra.mxu0 0.0
    %101 = vmatprep.subr.mxu0 0.0
    %102 = vmatpush1.msra.mxu0 0.0
    %103 = vmatprep.subr.mxu0 0.0
    %104 = vmatpush1.msra.mxu0 0.0
    %105 = vmatprep.subr.mxu0 0.0
    %106 = vmatpush1.msra.mxu0 0.0
    %107 = vmatprep.subr.mxu0 0.0
    %108 = vmatpush1.msra.mxu0 0.0
    %109 = vmatprep.mubr.f32.mxu0 0.0
    %110 = vmatmul.mubr.f32.gmra.mrb[0].mxu0 %v21
    %v111 = vpop.f32.mrb[0].mxu0
    %v112 = vadd.f32 %v43, %v111
    %v113 = vpop.f32.mrb[0].mxu0
    %114 = vdwg.mxu0
    %v115 = vld [vmem:[%s3] sm:$0xff]
    %v116 = vld [vmem:[%s3 + $0x8] sm:$0xff]
    %v117 = vld [vmem:[%s3 + $0x10] sm:$0xff]
    %v118 = vld [vmem:[%s3 + $0x18] sm:$0xff]
    %v119 = vld [vmem:[%s3 + $0x20] sm:$0xff]
    %v120 = vld [vmem:[%s3 + $0x28] sm:$0xff]
    %v121 = vld [vmem:[%s3 + $0x30] sm:$0xff]
    %v122 = vld [vmem:[%s3 + $0x38] sm:$0xff]
    %v123 = vld [vmem:[%s3 + $0x40] sm:$0xff]
    %v124 = vld [vmem:[%s3 + $0x48] sm:$0xff]
    %v125 = vld [vmem:[%s3 + $0x50] sm:$0xff]
    %v126 = vld [vmem:[%s3 + $0x58] sm:$0xff]
    %v127 = vld [vmem:[%s3 + $0x60] sm:$0xff]
    %v128 = vld [vmem:[%s3 + $0x68] sm:$0xff]
    %v129 = vld [vmem:[%s3 + $0x70] sm:$0xff]
    %v130 = vld [vmem:[%s3 + $0x78] sm:$0xff]
    %v131 = vld [vmem:[%s4] sm:$0x1]
    %v133 = vlaneseq
    %v134 = vshrl.u32 %v133, 7
    %v135 = vsub.s32 0, %v134
    %v136 = vrot.slane %v131, %v135
    %138 = vmatprep.subr.mxu0 0.0
    %139 = vmatpush1.msra.mxu0 %v115
    %140 = vmatprep.subr.mxu0 0.0
    %141 = vmatpush1.msra.mxu0 %v116
    %142 = vmatprep.subr.mxu0 0.0
    %143 = vmatpush1.msra.mxu0 %v117
    %144 = vmatprep.subr.mxu0 0.0
    %145 = vmatpush1.msra.mxu0 %v118
    %146 = vmatprep.subr.mxu0 0.0
    %147 = vmatpush1.msra.mxu0 %v119
    %148 = vmatprep.subr.mxu0 0.0
    %149 = vmatpush1.msra.mxu0 %v120
    %150 = vmatprep.subr.mxu0 0.0
    %151 = vmatpush1.msra.mxu0 %v121
    %152 = vmatprep.subr.mxu0 0.0
    %153 = vmatpush1.msra.mxu0 %v122
    %154 = vmatprep.subr.mxu0 0.0
    %155 = vmatpush1.msra.mxu0 %v123
    %156 = vmatprep.subr.mxu0 0.0
    %157 = vmatpush1.msra.mxu0 %v124
    %158 = vmatprep.subr.mxu0 0.0
    %159 = vmatpush1.msra.mxu0 %v125
    %160 = vmatprep.subr.mxu0 0.0
    %161 = vmatpush1.msra.mxu0 %v126
    %162 = vmatprep.subr.mxu0 0.0
    %163 = vmatpush1.msra.mxu0 %v127
    %164 = vmatprep.subr.mxu0 0.0
    %165 = vmatpush1.msra.mxu0 %v128
    %166 = vmatprep.subr.mxu0 0.0
    %167 = vmatpush1.msra.mxu0 %v129
    %168 = vmatprep.subr.mxu0 0.0
    %169 = vmatpush1.msra.mxu0 %v130
    %170 = vmatprep.subr.mxu0 0.0
    %171 = vmatpush1.msra.mxu0 0.0
    %172 = vmatprep.subr.mxu0 0.0
    %173 = vmatpush1.msra.mxu0 0.0
    %174 = vmatprep.subr.mxu0 0.0
    %175 = vmatpush1.msra.mxu0 0.0
    %176 = vmatprep.subr.mxu0 0.0
    %177 = vmatpush1.msra.mxu0 0.0
    %178 = vmatprep.subr.mxu0 0.0
    %179 = vmatpush1.msra.mxu0 0.0
    %180 = vmatprep.subr.mxu0 0.0
    %181 = vmatpush1.msra.mxu0 0.0
    %182 = vmatprep.subr.mxu0 0.0
    %183 = vmatpush1.msra.mxu0 0.0
    %184 = vmatprep.subr.mxu0 0.0
    %185 = vmatpush1.msra.mxu0 0.0
    %186 = vmatprep.subr.mxu0 0.0
    %187 = vmatpush1.msra.mxu0 0.0
    %188 = vmatprep.subr.mxu0 0.0
    %189 = vmatpush1.msra.mxu0 0.0
    %190 = vmatprep.subr.mxu0 0.0
    %191 = vmatpush1.msra.mxu0 0.0
    %192 = vmatprep.subr.mxu0 0.0
    %193 = vmatpush1.msra.mxu0 0.0
    %194 = vmatprep.subr.mxu0 0.0
    %195 = vmatpush1.msra.mxu0 0.0
    %196 = vmatprep.subr.mxu0 0.0
    %197 = vmatpush1.msra.mxu0 0.0
    %198 = vmatprep.subr.mxu0 0.0
    %199 = vmatpush1.msra.mxu0 0.0
    %200 = vmatprep.subr.mxu0 0.0
    %201 = vmatpush1.msra.mxu0 0.0
    %202 = vmatprep.mubr.f32.mxu0 0.0
    %203 = vmatmul.mubr.f32.gmra.mrb[0].mxu0 %v112
    %v204 = vpop.f32.mrb[0].mxu0
    %v205 = vadd.f32 %v136, %v204
    %v206 = vpop.f32.mrb[0].mxu0
    %207 = vdwg.mxu0
    %208 = vmax.xlane.f32.xlu0 %v205
    %v209 = vpop.xlane.xlu0 %208
    %v210 = vsub.f32 %v205, %v209
    %v211 = vmul.f32 %v210, 1.442695
    %v212 = vpow.pop %v211
    %213 = vadd.xlane.f32.xlu0 %v212
    %v214 = vpop.xlane.xlu0 %213
    %v215 = vrcp.pop %v214
    %v216 = vmul.f32 %v212, %v215
    %217 = vst [vmem:[#allocation2] sm:$0xff] %v216
    // Predicated region
    $region22: #{softmax_mlp.1} parent=1 // pred_check
      _
    $region23: #{softmax_mlp.1} parent=1 // pred_check_branch
      %219 = sbr.rel (0) target = $region25
    $region24: #{softmax_mlp.1} parent=1 // pred_region
      %s221 = ssub.s32 128, 128
      %222 = vsyncadd [#allocation3], %s221
      %s224 = sshll.u32 [#allocation2], 4
      %s225 = int_to_ptr.vmem [resolvable:$true] %s224
      %227 = dma.vmem_to_hbm [thread:$0]  %s225, 128, %s5, [#allocation3]
    $region25: #{softmax_mlp.1} parent=1 // pred_fallthru
      _
    // Predicated region
    $region26: #{softmax_mlp.1} parent=1 // pred_check
      _
    $region27: #{softmax_mlp.1} parent=1 // pred_check_branch
      %229 = sbr.rel (0) target = $region29
    $region28: #{softmax_mlp.1} parent=1 // pred_region
      %230 = dma.done [#allocation3], 128
    $region29: #{softmax_mlp.1} parent=1 // pred_fallthru
      _
    %231 = vsyncpa [#allocation3], 1

</llo_original>
